<compile_context>
chip_gen: v5e
topology: v5e:2x2
jax: 0.10.0
libtpu: 0.0.40
codegen_flags: <defaults>
</compile_context>

<pallas_src>
import jax
import jax.numpy as jnp
from jax.experimental import pallas as pl
from jax.experimental.pallas import tpu as pltpu

OUT_LANES = 128      # lane-dense output width (sliced back to 1 column in wrapper)
PACK_W = 128         # packed-parameter tile width (== hidden_size)
NUM_EMB = 196        # nn.Embedding(196, E)

# Row indices inside the packed (10, 128) parameter tile.
R_WIHR, R_WIHZ, R_WIHN = 0, 1, 2
R_BR, R_BZ, R_BIN, R_BHN = 3, 4, 5, 6
R_WOH = 7
R_TP0, R_TP1 = 8, 9
N_PACK_ROWS = 10


def _row(packed_ref, r):
    """(1, 128) static sublane slice of the resident packed-parameter tile."""
    return packed_ref[r:r + 1, :]


def _gru_step_math(x, h, idx, w_hh_ref, packed_ref):
    """One GRU step + output head.

    x (B,1) f32, h (B,H) f32, idx (B,1) int32 -> (out (B,1) f32, h_new (B,H) f32)
    """
    B, H = h.shape

    # Fused hidden->hidden matmul: one bf16 MXU weight stream, f32 accumulate.
    hg = jnp.dot(h.astype(jnp.bfloat16), w_hh_ref[...],
                 preferred_element_type=jnp.float32)              # (B, 3H)
    hr, hz, hn = hg[:, :H], hg[:, H:2 * H], hg[:, 2 * H:]         # vreg-aligned

    # Gate math stays f32 on the VPU (PyTorch nn.GRU semantics: b_hn scaled by r).
    r = jax.nn.sigmoid(x * _row(packed_ref, R_WIHR) + hr + _row(packed_ref, R_BR))
    z = jax.nn.sigmoid(x * _row(packed_ref, R_WIHZ) + hz + _row(packed_ref, R_BZ))
    n = jnp.tanh(x * _row(packed_ref, R_WIHN) + _row(packed_ref, R_BIN)
                 + r * (hn + _row(packed_ref, R_BHN)))
    h_new = (1.0 - z) * n + z * h                                  # (B, H)

    # Output head.  The embedding contribution + output bias were folded into
    # table_proj = emb_table @ w_oe + b_o; gather it with a one-hot VPU multiply
    # over the two 128-lane halves + lane reductions (no MXU, no table DMA).
    lane = jax.lax.broadcasted_iota(jnp.int32, (B, PACK_W), 1)
    oh0 = (lane == idx).astype(jnp.float32)                        # rows   0..127
    oh1 = ((lane + PACK_W) == idx).astype(jnp.float32)             # rows 128..255
    emb_term = (jnp.sum(oh0 * _row(packed_ref, R_TP0), axis=-1, keepdims=True)
                + jnp.sum(oh1 * _row(packed_ref, R_TP1), axis=-1, keepdims=True))
    h_term = jnp.sum(h_new * _row(packed_ref, R_WOH), axis=-1, keepdims=True)
    out = jax.nn.sigmoid(emb_term + h_term)                        # (B, 1)
    return out, h_new


# ----------------------------- Pallas kernels --------------------------------
def gru_step_kernel(x_ref, h_ref, tidx_ref, w_hh_ref, packed_ref,
                    out_ref, h_out_ref):
    """Single GRUdirectly.forward step (module-faithful)."""
    out, h_new = _gru_step_math(x_ref[...], h_ref[...], tidx_ref[...],
                                w_hh_ref, packed_ref)
    h_out_ref[...] = h_new
    out_ref[...] = jnp.broadcast_to(out, out_ref.shape)            # lane-dense


def gru_rollout_kernel(x_ref, tidx_ref, h0_ref, w_hh_ref, packed_ref,
                       out_ref, h_final_ref, h_acc):
    """T fused applications of the forward; grid axis 0 is time (sequential)."""
    t = pl.program_id(0)

    @pl.when(t == 0)
    def _():
        h_acc[...] = h0_ref[...]

    out, h_new = _gru_step_math(x_ref[0], h_acc[...], tidx_ref[0],
                                w_hh_ref, packed_ref)
    h_acc[...] = h_new
    out_ref[...] = jnp.broadcast_to(out, out_ref.shape)            # (1, B, 128)

    @pl.when(t == pl.num_programs(0) - 1)
    def _():
        h_final_ref[...] = h_new


# --------------------------- parameter preparation ---------------------------
def init_params(key, hidden_size, embedding_size, output_size=1):
    """Raw, PyTorch-layout parameters."""
    H, E, O = hidden_size, embedding_size, output_size
    ks = jax.random.split(key, 7)
    k_gru = 1.0 / jnp.sqrt(jnp.float32(H))
    k_out = 1.0 / jnp.sqrt(jnp.float32(H + E))
    return {
        "emb_table": jax.random.normal(ks[0], (NUM_EMB, E), dtype=jnp.float32),
        "w_ih": jax.random.uniform(ks[1], (3 * H, 1), minval=-k_gru, maxval=k_gru),
        "w_hh": jax.random.uniform(ks[2], (3 * H, H), minval=-k_gru, maxval=k_gru),
        "b_ih": jax.random.uniform(ks[3], (3 * H,), minval=-k_gru, maxval=k_gru),
        "b_hh": jax.random.uniform(ks[4], (3 * H,), minval=-k_gru, maxval=k_gru),
        "w_out": jax.random.uniform(ks[5], (O, E + H), minval=-k_out, maxval=k_out),
        "b_out": jax.random.uniform(ks[6], (O,), minval=-k_out, maxval=k_out),
    }


def prepare_params(raw):
    """Kernel layout: fused bf16 (H,3H) w_hh + one packed (10,128) f32 tile."""
    H = raw["w_hh"].shape[1]
    E = raw["emb_table"].shape[1]
    assert H == PACK_W, "packed-parameter layout assumes hidden_size == 128"

    w_ih, w_hh = raw["w_ih"], raw["w_hh"]          # (3H,1), (3H,H)
    b_ih, b_hh = raw["b_ih"], raw["b_hh"]          # (3H,),  (3H,)
    w_out, b_out = raw["w_out"], raw["b_out"]      # (1,E+H) cols [emb|h], (1,)

    def gate(a, g):  # PyTorch gate order: r, z, n
        return a[g * H:(g + 1) * H]

    # Fused hidden->hidden weight (H, 3H), columns [r | z | n], MXU-native bf16.
    w_hh_all = jnp.concatenate(
        [gate(w_hh, 0).T, gate(w_hh, 1).T, gate(w_hh, 2).T], axis=1
    ).astype(jnp.bfloat16)

    # Fold the whole embedding path + output bias into one 256-entry vector.
    tp = raw["emb_table"] @ w_out[0, :E] + b_out[0]                # (196,)
    tp = jnp.pad(tp, (0, 2 * PACK_W - tp.shape[0]))                # (256,)

    packed = jnp.stack([
        gate(w_ih, 0)[:, 0],                      # w_ihr
        gate(w_ih, 1)[:, 0],                      # w_ihz
        gate(w_ih, 2)[:, 0],                      # w_ihn
        gate(b_ih, 0) + gate(b_hh, 0),            # b_r (pre-summed)
        gate(b_ih, 1) + gate(b_hh, 1),            # b_z (pre-summed)
        gate(b_ih, 2),                            # b_in
        gate(b_hh, 2),                            # b_hn (stays separate, scaled by r)
        w_out[0, E:],                             # w_oh
        tp[:PACK_W],                              # table_proj rows   0..127
        tp[PACK_W:],                              # table_proj rows 128..255
    ], axis=0).astype(jnp.float32)                # (10, 128)

    return {"w_hh": w_hh_all, "packed": packed}


# ------------------------------ JAX wrappers ----------------------------------
@jax.jit
def gru_directly_forward(kp, input_speed, time_idx, hidden):
    """Mirrors GRUdirectly.forward (single step).

    input_speed (B,), time_idx (B,) int, hidden (1,B,H) -> (out (B,1), hidden (1,B,H))
    """
    H = kp["w_hh"].shape[0]
    B = input_speed.shape[0]
    x = input_speed.reshape(B, 1).astype(jnp.float32)
    h0 = hidden.reshape(B, H).astype(jnp.float32)
    tidx = time_idx.reshape(B, 1).astype(jnp.int32)

    vmem = pl.BlockSpec(memory_space=pltpu.MemorySpace.VMEM)
    out_pad, h_new = pl.pallas_call(
        gru_step_kernel,
        out_shape=(jax.ShapeDtypeStruct((B, OUT_LANES), jnp.float32),
                   jax.ShapeDtypeStruct((B, H), jnp.float32)),
        in_specs=[vmem] * 5,
        out_specs=(vmem, vmem),
    )(x, h0, tidx, kp["w_hh"], kp["packed"])

    return out_pad[:, :1], h_new.reshape(1, B, H)


@jax.jit
def gru_directly_rollout(kp, speeds, times, hidden):
    """T fused sequential applications of GRUdirectly.forward.

    speeds (T,B) f32, times (T,B) int, hidden (1,B,H)
    -> (outs (T,B,1), hidden (1,B,H))
    """
    H = kp["w_hh"].shape[0]
    T, B = speeds.shape
    x_all = speeds.reshape(T, B, 1).astype(jnp.float32)
    t_all = times.reshape(T, B, 1).astype(jnp.int32)
    h0 = hidden.reshape(B, H).astype(jnp.float32)

    outs, h_final = pl.pallas_call(
        gru_rollout_kernel,
        out_shape=(jax.ShapeDtypeStruct((T, B, OUT_LANES), jnp.float32),
                   jax.ShapeDtypeStruct((B, H), jnp.float32)),
        grid=(T,),
        in_specs=[
            pl.BlockSpec((1, B, 1), lambda t: (t, 0, 0)),            # x_t stream
            pl.BlockSpec((1, B, 1), lambda t: (t, 0, 0)),            # tidx_t stream
            pl.BlockSpec((B, H), lambda t: (0, 0)),                  # h0 (resident)
            pl.BlockSpec((H, 3 * H), lambda t: (0, 0)),              # w_hh (resident)
            pl.BlockSpec((N_PACK_ROWS, PACK_W), lambda t: (0, 0)),   # packed (resident)
        ],
        out_specs=(
            pl.BlockSpec((1, B, OUT_LANES), lambda t: (t, 0, 0)),    # per-step out
            pl.BlockSpec((B, H), lambda t: (0, 0)),                  # final hidden
        ),
        scratch_shapes=[pltpu.VMEM((B, H), jnp.float32)],            # hidden carry
        compiler_params=pltpu.CompilerParams(
            dimension_semantics=("arbitrary",)),
    )(x_all, t_all, h0, kp["w_hh"], kp["packed"])

    return outs[..., :1], h_final.reshape(1, B, H)


# ----------------------- pure-JAX references (checks) -------------------------
def reference_forward(raw, input_speed, time_idx, hidden):
    H = raw["w_hh"].shape[1]
    B = input_speed.shape[0]
    emb = jnp.take(raw["emb_table"], time_idx, axis=0)               # (B, E)
    x = input_speed.reshape(B, 1).astype(jnp.float32)
    h = hidden.reshape(B, H)
    gi = x @ raw["w_ih"].T + raw["b_ih"]                             # (B, 3H)
    gh = h @ raw["w_hh"].T + raw["b_hh"]                             # (B, 3H)
    r = jax.nn.sigmoid(gi[:, :H] + gh[:, :H])
    z = jax.nn.sigmoid(gi[:, H:2 * H] + gh[:, H:2 * H])
    n = jnp.tanh(gi[:, 2 * H:] + r * gh[:, 2 * H:])
    h_new = (1.0 - z) * n + z * h
    cat = jnp.concatenate([emb, h_new], axis=1)
    out = jax.nn.sigmoid(cat @ raw["w_out"].T + raw["b_out"])
    return out, h_new.reshape(1, B, H)


def reference_rollout(raw, speeds, times, hidden):
    outs = []
    h = hidden
    for t in range(speeds.shape[0]):
        o, h = reference_forward(raw, speeds[t], times[t], h)
        outs.append(o)
    return jnp.stack(outs, axis=0), h


if __name__ == "__main__":
    B, H, E, T = 8, 128, 64, 16   # module defaults for H/E, small batch & rollout

    key = jax.random.PRNGKey(0)
    k_param, k_speed, k_time, k_hid = jax.random.split(key, 4)

    raw = init_params(k_param, hidden_size=H, embedding_size=E)
    kp = prepare_params(raw)

    # --- single step (module-faithful forward), random hidden to exercise bf16 MXU
    input_speed = jax.random.normal(k_speed, (B,), dtype=jnp.float32)
    time_idx = jax.random.randint(k_time, (B,), 0, NUM_EMB, dtype=jnp.int32)
    hidden = 0.5 * jax.random.normal(k_hid, (1, B, H), dtype=jnp.float32)

    out, h_new = gru_directly_forward(kp, input_speed, time_idx, hidden)
    jax.block_until_ready((out, h_new))

    out_ref, h_ref = reference_forward(raw, input_speed, time_idx, hidden)
    assert out.shape == (B, 1) and h_new.shape == (1, B, H)
    # bf16 MXU operands (f32 accumulate) -> allow ~1e-3-level deviation vs f32 ref.
    assert jnp.allclose(out, out_ref, atol=2e-2)
    assert jnp.allclose(h_new, h_ref, atol=2e-2)

    # --- fused multi-step rollout (T sequential forward calls in one pallas_call)
    speeds = jax.random.normal(k_speed, (T, B), dtype=jnp.float32)
    times = jax.random.randint(k_time, (T, B), 0, NUM_EMB, dtype=jnp.int32)
    h0 = jnp.zeros((1, B, H), dtype=jnp.float32)           # initHidden()

    outs, h_T = gru_directly_rollout(kp, speeds, times, h0)
    jax.block_until_ready((outs, h_T))

    outs_ref, h_T_ref = reference_rollout(raw, speeds, times, h0)
    assert outs.shape == (T, B, 1) and h_T.shape == (1, B, H)
    assert jnp.allclose(outs, outs_ref, atol=2e-2)
    assert jnp.allclose(h_T, h_T_ref, atol=2e-2)

    print("KERNEL_OK")
</pallas_src>

<mosaic_0001>
module attributes {stable_mosaic.version = 11 : i64} {
  func.func @gru_step_kernel(%arg0: memref<8x1xf32, #tpu.memory_space<vmem>>, %arg1: memref<8x128xf32, #tpu.memory_space<vmem>>, %arg2: memref<8x1xi32, #tpu.memory_space<vmem>>, %arg3: memref<128x384xbf16, #tpu.memory_space<vmem>>, %arg4: memref<10x128xf32, #tpu.memory_space<vmem>>, %arg5: memref<8x128xf32, #tpu.memory_space<vmem>>, %arg6: memref<8x128xf32, #tpu.memory_space<vmem>>) attributes {dimension_semantics = [], scalar_prefetch = 0 : i64, scratch_operands = 0 : i64, tpu.core_type = #tpu.core_type<tc>} {
    %c0 = arith.constant 0 : index
    %c0_0 = arith.constant 0 : index
    %0 = vector.load %arg0[%c0, %c0_0] : memref<8x1xf32, #tpu.memory_space<vmem>>, vector<8x1xf32>
    %c0_1 = arith.constant 0 : index
    %c0_2 = arith.constant 0 : index
    %1 = vector.load %arg1[%c0_1, %c0_2] : memref<8x128xf32, #tpu.memory_space<vmem>>, vector<8x128xf32>
    %c0_3 = arith.constant 0 : index
    %c0_4 = arith.constant 0 : index
    %2 = vector.load %arg2[%c0_3, %c0_4] : memref<8x1xi32, #tpu.memory_space<vmem>>, vector<8x1xi32>
    %3 = arith.truncf %1 : vector<8x128xf32> to vector<8x128xbf16>
    %c0_5 = arith.constant 0 : index
    %c0_6 = arith.constant 0 : index
    %4 = vector.load %arg3[%c0_5, %c0_6] : memref<128x384xbf16, #tpu.memory_space<vmem>>, vector<128x384xbf16>
    %cst = arith.constant dense<0.000000e+00> : vector<8x384xf32>
    %5 = tpu.matmul %3, %4, %cst {dimension_numbers = #tpu.dot_dimension_numbers<[1], [0], [0], [1], [0, 0, 1, 1], [], []>} : vector<8x128xbf16>, vector<128x384xbf16>, vector<8x384xf32> -> vector<8x384xf32>
    %6 = vector.extract_strided_slice %5 {offsets = [0, 0], sizes = [8, 128], strides = [1, 1]} : vector<8x384xf32> to vector<8x128xf32>
    %7 = vector.extract_strided_slice %5 {offsets = [0, 128], sizes = [8, 128], strides = [1, 1]} : vector<8x384xf32> to vector<8x128xf32>
    %8 = vector.extract_strided_slice %5 {offsets = [0, 256], sizes = [8, 128], strides = [1, 1]} : vector<8x384xf32> to vector<8x128xf32>
    %c0_7 = arith.constant 0 : index
    %c0_8 = arith.constant 0 : index
    %9 = vector.load %arg4[%c0_7, %c0_8] : memref<10x128xf32, #tpu.memory_space<vmem>>, vector<1x128xf32>
    %10 = vector.broadcast %0 : vector<8x1xf32> to vector<8x128xf32>
    %11 = vector.broadcast %9 : vector<1x128xf32> to vector<8x128xf32>
    %12 = arith.mulf %10, %11 : vector<8x128xf32>
    %13 = arith.addf %12, %6 : vector<8x128xf32>
    %c3 = arith.constant 3 : index
    %c0_9 = arith.constant 0 : index
    %14 = vector.load %arg4[%c3, %c0_9] : memref<10x128xf32, #tpu.memory_space<vmem>>, vector<1x128xf32>
    %15 = vector.broadcast %14 : vector<1x128xf32> to vector<8x128xf32>
    %16 = arith.addf %13, %15 : vector<8x128xf32>
    %17 = arith.negf %16 : vector<8x128xf32>
    %18 = math.exp %17 : vector<8x128xf32>
    %cst_10 = arith.constant 1.000000e+00 : f32
    %19 = vector.broadcast %cst_10 : f32 to vector<8x128xf32>
    %20 = arith.addf %19, %18 : vector<8x128xf32>
    %21 = arith.divf %19, %20 : vector<8x128xf32>
    %c1 = arith.constant 1 : index
    %c0_11 = arith.constant 0 : index
    %22 = vector.load %arg4[%c1, %c0_11] : memref<10x128xf32, #tpu.memory_space<vmem>>, vector<1x128xf32>
    %23 = vector.broadcast %0 : vector<8x1xf32> to vector<8x128xf32>
    %24 = vector.broadcast %22 : vector<1x128xf32> to vector<8x128xf32>
    %25 = arith.mulf %23, %24 : vector<8x128xf32>
    %26 = arith.addf %25, %7 : vector<8x128xf32>
    %c4 = arith.constant 4 : index
    %c0_12 = arith.constant 0 : index
    %27 = vector.load %arg4[%c4, %c0_12] : memref<10x128xf32, #tpu.memory_space<vmem>>, vector<1x128xf32>
    %28 = vector.broadcast %27 : vector<1x128xf32> to vector<8x128xf32>
    %29 = arith.addf %26, %28 : vector<8x128xf32>
    %30 = arith.negf %29 : vector<8x128xf32>
    %31 = math.exp %30 : vector<8x128xf32>
    %cst_13 = arith.constant 1.000000e+00 : f32
    %32 = vector.broadcast %cst_13 : f32 to vector<8x128xf32>
    %33 = arith.addf %32, %31 : vector<8x128xf32>
    %34 = arith.divf %32, %33 : vector<8x128xf32>
    %c2 = arith.constant 2 : index
    %c0_14 = arith.constant 0 : index
    %35 = vector.load %arg4[%c2, %c0_14] : memref<10x128xf32, #tpu.memory_space<vmem>>, vector<1x128xf32>
    %36 = vector.broadcast %0 : vector<8x1xf32> to vector<8x128xf32>
    %37 = vector.broadcast %35 : vector<1x128xf32> to vector<8x128xf32>
    %38 = arith.mulf %36, %37 : vector<8x128xf32>
    %c5 = arith.constant 5 : index
    %c0_15 = arith.constant 0 : index
    %39 = vector.load %arg4[%c5, %c0_15] : memref<10x128xf32, #tpu.memory_space<vmem>>, vector<1x128xf32>
    %40 = vector.broadcast %39 : vector<1x128xf32> to vector<8x128xf32>
    %41 = arith.addf %38, %40 : vector<8x128xf32>
    %c6 = arith.constant 6 : index
    %c0_16 = arith.constant 0 : index
    %42 = vector.load %arg4[%c6, %c0_16] : memref<10x128xf32, #tpu.memory_space<vmem>>, vector<1x128xf32>
    %43 = vector.broadcast %42 : vector<1x128xf32> to vector<8x128xf32>
    %44 = arith.addf %8, %43 : vector<8x128xf32>
    %45 = arith.mulf %21, %44 : vector<8x128xf32>
    %46 = arith.addf %41, %45 : vector<8x128xf32>
    %47 = math.tanh %46 : vector<8x128xf32>
    %cst_17 = arith.constant 1.000000e+00 : f32
    %48 = vector.broadcast %cst_17 : f32 to vector<8x128xf32>
    %49 = arith.subf %48, %34 : vector<8x128xf32>
    %50 = arith.mulf %49, %47 : vector<8x128xf32>
    %51 = arith.mulf %34, %1 : vector<8x128xf32>
    %52 = arith.addf %50, %51 : vector<8x128xf32>
    %53 = tpu.iota {dimensions = array<i32: 1>} : vector<8x128xi32>
    %54 = vector.broadcast %2 : vector<8x1xi32> to vector<8x128xi32>
    %55 = arith.cmpi eq, %53, %54 : vector<8x128xi32>
    %56 = arith.extui %55 : vector<8x128xi1> to vector<8x128xi32>
    %57 = arith.sitofp %56 : vector<8x128xi32> to vector<8x128xf32>
    %c128_i32 = arith.constant 128 : i32
    %58 = vector.broadcast %c128_i32 : i32 to vector<8x128xi32>
    %59 = arith.addi %53, %58 : vector<8x128xi32>
    %60 = vector.broadcast %2 : vector<8x1xi32> to vector<8x128xi32>
    %61 = arith.cmpi eq, %59, %60 : vector<8x128xi32>
    %62 = arith.extui %61 : vector<8x128xi1> to vector<8x128xi32>
    %63 = arith.sitofp %62 : vector<8x128xi32> to vector<8x128xf32>
    %c8 = arith.constant 8 : index
    %c0_18 = arith.constant 0 : index
    %64 = vector.load %arg4[%c8, %c0_18] : memref<10x128xf32, #tpu.memory_space<vmem>>, vector<1x128xf32>
    %65 = vector.broadcast %64 : vector<1x128xf32> to vector<8x128xf32>
    %66 = arith.mulf %57, %65 : vector<8x128xf32>
    %cst_19 = arith.constant dense<0.000000e+00> : vector<8xf32>
    %67 = vector.multi_reduction <add>, %66, %cst_19 [1] : vector<8x128xf32> to vector<8xf32>
    %68 = vector.shape_cast %67 : vector<8xf32> to vector<8x1xf32>
    %c9 = arith.constant 9 : index
    %c0_20 = arith.constant 0 : index
    %69 = vector.load %arg4[%c9, %c0_20] : memref<10x128xf32, #tpu.memory_space<vmem>>, vector<1x128xf32>
    %70 = vector.broadcast %69 : vector<1x128xf32> to vector<8x128xf32>
    %71 = arith.mulf %63, %70 : vector<8x128xf32>
    %cst_21 = arith.constant dense<0.000000e+00> : vector<8xf32>
    %72 = vector.multi_reduction <add>, %71, %cst_21 [1] : vector<8x128xf32> to vector<8xf32>
    %73 = vector.shape_cast %72 : vector<8xf32> to vector<8x1xf32>
    %74 = arith.addf %68, %73 : vector<8x1xf32>
    %c7 = arith.constant 7 : index
    %c0_22 = arith.constant 0 : index
    %75 = vector.load %arg4[%c7, %c0_22] : memref<10x128xf32, #tpu.memory_space<vmem>>, vector<1x128xf32>
    %76 = vector.broadcast %75 : vector<1x128xf32> to vector<8x128xf32>
    %77 = arith.mulf %52, %76 : vector<8x128xf32>
    %cst_23 = arith.constant dense<0.000000e+00> : vector<8xf32>
    %78 = vector.multi_reduction <add>, %77, %cst_23 [1] : vector<8x128xf32> to vector<8xf32>
    %79 = vector.shape_cast %78 : vector<8xf32> to vector<8x1xf32>
    %80 = arith.addf %74, %79 : vector<8x1xf32>
    %81 = arith.negf %80 : vector<8x1xf32>
    %82 = math.exp %81 : vector<8x1xf32>
    %cst_24 = arith.constant 1.000000e+00 : f32
    %83 = vector.broadcast %cst_24 : f32 to vector<8x1xf32>
    %84 = arith.addf %83, %82 : vector<8x1xf32>
    %85 = arith.divf %83, %84 : vector<8x1xf32>
    %c0_25 = arith.constant 0 : index
    %c0_26 = arith.constant 0 : index
    %86 = vector.load %arg6[%c0_25, %c0_26] : memref<8x128xf32, #tpu.memory_space<vmem>>, vector<8x128xf32>
    tpu.vector_store %arg6[%c0_25, %c0_26], %52 {strides = array<i32>} : memref<8x128xf32, #tpu.memory_space<vmem>>, vector<8x128xf32>,
    %87 = vector.shape_cast %85 : vector<8x1xf32> to vector<8x1xf32>
    %88 = vector.broadcast %87 : vector<8x1xf32> to vector<8x128xf32>
    %c0_27 = arith.constant 0 : index
    %c0_28 = arith.constant 0 : index
    %89 = vector.load %arg5[%c0_27, %c0_28] : memref<8x128xf32, #tpu.memory_space<vmem>>, vector<8x128xf32>
    tpu.vector_store %arg5[%c0_27, %c0_28], %88 {strides = array<i32>} : memref<8x128xf32, #tpu.memory_space<vmem>>, vector<8x128xf32>,
    return
  }
}

</mosaic_0001>

<llo_original>
// kernel: gru_directly_forward.1
$region0: #{gru_directly_forward.1}
  #allocation0 [shape = 'u32[]', space=smem, size = 0x4, offset = 0x4, fixed_abs, tag = 'smem constant byte address 0x4 - core index']
  #allocation1 [shape = 'u32[72,128]{1,0:T(1,128)}', space=vmem, size = 0x9000, scoped, tag = 'internal scratch']
  %s0 = inlined_call_operand.vmem [shape: f32[8,1], index: 0, kind: input, shape index: {}]
  %s1 = inlined_call_operand.hbm [shape: f32[8,128], index: 1, kind: input, shape index: {}]
  %s2 = inlined_call_operand.vmem [shape: s32[8,1], index: 2, kind: input, shape index: {}]
  %s3 = inlined_call_operand.hbm [shape: bf16[128,384], index: 3, kind: input, shape index: {}]
  %s4 = inlined_call_operand.vmem [shape: f32[10,128], index: 4, kind: input, shape index: {}]
  %s5 = inlined_call_operand.vmem [shape: f32[8,128], index: 5, kind: output, shape index: {0}]
  %s6 = inlined_call_operand.hbm [shape: f32[8,128], index: 6, kind: output, shape index: {1}]
  %7 = xla_tuple %s5, %s6
  %s8 = sld [smem:[#allocation0]]
  $region46: #{gru_directly_forward.1} parent=0
    _
  %s10 = ssub.s32 1, %s8
  %s11 = scalar_select 0, %s10, %s8
  $region1: #{gru_directly_forward.1} parent=0
    #allocation2 [shape = 'u8[4096]{0}', space=vmem, size = 0x1000, scoped, tag = 'input window, operand 1, single buffered']
    #allocation3 [shape = 's32[1]{0}', space=sflag, size = 0x4, scoped, tag = 'scoped memory for gru_directly_forward.1']
    #allocation4 [shape = 's32[1]{0}', space=sflag, size = 0x4, scoped, tag = 'scoped memory for gru_directly_forward.1']
    #allocation5 [shape = 'u8[98304]{0}', space=vmem, size = 0x18000, scoped, tag = 'input window, operand 3, single buffered']
    #allocation6 [shape = 's32[1]{0}', space=sflag, size = 0x4, scoped, tag = 'scoped memory for gru_directly_forward.1']
    #allocation7 [shape = 'u8[4096]{0}', space=vmem, size = 0x1000, scoped, tag = 'output window, operand 1, single buffered']
    %12 = vsyncpa [#allocation3], 0
    %13 = vsyncpa [#allocation6], 0
    %14 = vsyncpa [#allocation4], 0
    // Predicated region
    $region2: #{gru_directly_forward.1} parent=1 // pred_check
      _
    $region3: #{gru_directly_forward.1} parent=1 // pred_check_branch
      %16 = sbr.rel (0) target = $region5
    $region4: #{gru_directly_forward.1} parent=1 // pred_region
      _
    $region5: #{gru_directly_forward.1} parent=1 // pred_fallthru
      _
    // Predicated region
    $region6: #{gru_directly_forward.1} parent=1 // pred_check
      _
    $region7: #{gru_directly_forward.1} parent=1 // pred_check_branch
      %18 = sbr.rel (0) target = $region9
    $region8: #{gru_directly_forward.1} parent=1 // pred_region
      %20 = vsyncadd [#allocation3], 0
      %s22 = sshll.u32 %s1, 4
      %s23 = int_to_ptr.hbm [resolvable:$true] %s22
      %s24 = sshll.u32 [#allocation2], 4
      %s25 = int_to_ptr.vmem [resolvable:$true] %s24
      %27 = dma.hbm_to_vmem [thread:$0]  %s23, 128, %s25, [#allocation3]
    $region9: #{gru_directly_forward.1} parent=1 // pred_fallthru
      _
    // Predicated region
    $region10: #{gru_directly_forward.1} parent=1 // pred_check
      _
    $region11: #{gru_directly_forward.1} parent=1 // pred_check_branch
      %29 = sbr.rel (0) target = $region13
    $region12: #{gru_directly_forward.1} parent=1 // pred_region
      _
    $region13: #{gru_directly_forward.1} parent=1 // pred_fallthru
      _
    // Predicated region
    $region14: #{gru_directly_forward.1} parent=1 // pred_check
      _
    $region15: #{gru_directly_forward.1} parent=1 // pred_check_branch
      %31 = sbr.rel (0) target = $region17
    $region16: #{gru_directly_forward.1} parent=1 // pred_region
      %33 = vsyncadd [#allocation6], 0
      %s34 = sshll.u32 %s3, 4
      %s35 = int_to_ptr.hbm [resolvable:$true] %s34
      %s36 = sshll.u32 [#allocation5], 4
      %s37 = int_to_ptr.vmem [resolvable:$true] %s36
      %42 = dma.hbm_to_vmem [thread:$0]  %s35, 3072, %s37, [#allocation6], 192, 192, 12
    $region17: #{gru_directly_forward.1} parent=1 // pred_fallthru
      _
    // Predicated region
    $region18: #{gru_directly_forward.1} parent=1 // pred_check
      _
    $region19: #{gru_directly_forward.1} parent=1 // pred_check_branch
      %44 = sbr.rel (0) target = $region21
    $region20: #{gru_directly_forward.1} parent=1 // pred_region
      _
    $region21: #{gru_directly_forward.1} parent=1 // pred_fallthru
      _
    // Predicated region
    $region22: #{gru_directly_forward.1} parent=1 // pred_check
      _
    $region23: #{gru_directly_forward.1} parent=1 // pred_check_branch
      %46 = sbr.rel (0) target = $region25
    $region24: #{gru_directly_forward.1} parent=1 // pred_region
      %48 = dma.done [#allocation3], 128
    $region25: #{gru_directly_forward.1} parent=1 // pred_fallthru
      _
    // Predicated region
    $region26: #{gru_directly_forward.1} parent=1 // pred_check
      _
    $region27: #{gru_directly_forward.1} parent=1 // pred_check_branch
      %50 = sbr.rel (0) target = $region29
    $region28: #{gru_directly_forward.1} parent=1 // pred_region
      %52 = dma.done [#allocation6], 3072
    $region29: #{gru_directly_forward.1} parent=1 // pred_fallthru
      _
    %v53 = vld [vmem:[%s0] sm:$0xff]
    %v54 = vld [vmem:[#allocation2] sm:$0xff]
    %v55 = vld [vmem:[%s2] sm:$0xff]
    %v56 = vpack.c.bf16 %v54, %v54
    %v57 = vld [vmem:[#allocation5] sm:$0xff]
    %v58 = vld [vmem:[#allocation5 + $0x8] sm:$0xf]
    %v59 = vld [vmem:[#allocation5 + $0xc] sm:$0xff]
    %v60 = vld [vmem:[#allocation5 + $0x14] sm:$0xf]
    %v61 = vld [vmem:[#allocation5 + $0x18] sm:$0xff]
    %v62 = vld [vmem:[#allocation5 + $0x20] sm:$0xf]
    %v63 = vld [vmem:[#allocation5 + $0x24] sm:$0xff]
    %v64 = vld [vmem:[#allocation5 + $0x2c] sm:$0xf]
    %v65 = vld [vmem:[#allocation5 + $0x30] sm:$0xff]
    %v66 = vld [vmem:[#allocation5 + $0x38] sm:$0xf]
    %v67 = vld [vmem:[#allocation5 + $0x3c] sm:$0xff]
    %v68 = vld [vmem:[#allocation5 + $0x44] sm:$0xf]
    %v69 = vld [vmem:[#allocation5 + $0x48] sm:$0xff]
    %v70 = vld [vmem:[#allocation5 + $0x50] sm:$0xf]
    %v71 = vld [vmem:[#allocation5 + $0x54] sm:$0xff]
    %v72 = vld [vmem:[#allocation5 + $0x5c] sm:$0xf]
    %v73 = vld [vmem:[#allocation5 + $0x60] sm:$0xff]
    %v74 = vld [vmem:[#allocation5 + $0x68] sm:$0xf]
    %v75 = vld [vmem:[#allocation5 + $0x6c] sm:$0xff]
    %v76 = vld [vmem:[#allocation5 + $0x74] sm:$0xf]
    %v77 = vld [vmem:[#allocation5 + $0x78] sm:$0xff]
    %v78 = vld [vmem:[#allocation5 + $0x80] sm:$0xf]
    %v79 = vld [vmem:[#allocation5 + $0x84] sm:$0xff]
    %v80 = vld [vmem:[#allocation5 + $0x8c] sm:$0xf]
    %v81 = vld [vmem:[#allocation5 + $0x90] sm:$0xff]
    %v82 = vld [vmem:[#allocation5 + $0x98] sm:$0xf]
    %v83 = vld [vmem:[#allocation5 + $0x9c] sm:$0xff]
    %v84 = vld [vmem:[#allocation5 + $0xa4] sm:$0xf]
    %v85 = vld [vmem:[#allocation5 + $0xa8] sm:$0xff]
    %v86 = vld [vmem:[#allocation5 + $0xb0] sm:$0xf]
    %v87 = vld [vmem:[#allocation5 + $0xb4] sm:$0xff]
    %v88 = vld [vmem:[#allocation5 + $0xbc] sm:$0xf]
    %v121 = vunpack.c.l.b16 %v57
    %v122 = vunpack.c.h.b16 %v57
    %v123 = vunpack.c.l.b16 %v58
    %v124 = vunpack.c.l.b16 %v59
    %v125 = vunpack.c.h.b16 %v59
    %v126 = vunpack.c.l.b16 %v60
    %v127 = vunpack.c.l.b16 %v61
    %v128 = vunpack.c.h.b16 %v61
    %v129 = vunpack.c.l.b16 %v62
    %v130 = vunpack.c.l.b16 %v63
    %v131 = vunpack.c.h.b16 %v63
    %v132 = vunpack.c.l.b16 %v64
    %v133 = vunpack.c.l.b16 %v65
    %v134 = vunpack.c.h.b16 %v65
    %v135 = vunpack.c.l.b16 %v66
    %v136 = vunpack.c.l.b16 %v67
    %v137 = vunpack.c.h.b16 %v67
    %v138 = vunpack.c.l.b16 %v68
    %v139 = vunpack.c.l.b16 %v69
    %v140 = vunpack.c.h.b16 %v69
    %v141 = vunpack.c.l.b16 %v70
    %v142 = vunpack.c.l.b16 %v71
    %v143 = vunpack.c.h.b16 %v71
    %v144 = vunpack.c.l.b16 %v72
    %v145 = vunpack.c.l.b16 %v73
    %v146 = vunpack.c.h.b16 %v73
    %v147 = vunpack.c.l.b16 %v74
    %v148 = vunpack.c.l.b16 %v75
    %v149 = vunpack.c.h.b16 %v75
    %v150 = vunpack.c.l.b16 %v76
    %v151 = vunpack.c.l.b16 %v77
    %v152 = vunpack.c.h.b16 %v77
    %v153 = vunpack.c.l.b16 %v78
    %v154 = vunpack.c.l.b16 %v79
    %v155 = vunpack.c.h.b16 %v79
    %v156 = vunpack.c.l.b16 %v80
    %v157 = vunpack.c.l.b16 %v81
    %v158 = vunpack.c.h.b16 %v81
    %v159 = vunpack.c.l.b16 %v82
    %v160 = vunpack.c.l.b16 %v83
    %v161 = vunpack.c.h.b16 %v83
    %v162 = vunpack.c.l.b16 %v84
    %v163 = vunpack.c.l.b16 %v85
    %v164 = vunpack.c.h.b16 %v85
    %v165 = vunpack.c.l.b16 %v86
    %v166 = vunpack.c.l.b16 %v87
    %v167 = vunpack.c.h.b16 %v87
    %v168 = vunpack.c.l.b16 %v88
    %v169 = vpack.c.b16 %v124, %v121
    %v170 = vpack.c.b16 %v125, %v122
    %v171 = vpack.c.b16 %v126, %v123
    %v172 = vpack.c.b16 %v130, %v127
    %v173 = vpack.c.b16 %v131, %v128
    %v174 = vpack.c.b16 %v132, %v129
    %v175 = vpack.c.b16 %v136, %v133
    %v176 = vpack.c.b16 %v137, %v134
    %v177 = vpack.c.b16 %v138, %v135
    %v178 = vpack.c.b16 %v142, %v139
    %v179 = vpack.c.b16 %v143, %v140
    %v180 = vpack.c.b16 %v144, %v141
    %v181 = vpack.c.b16 %v148, %v145
    %v182 = vpack.c.b16 %v149, %v146
    %v183 = vpack.c.b16 %v150, %v147
    %v184 = vpack.c.b16 %v154, %v151
    %v185 = vpack.c.b16 %v155, %v152
    %v186 = vpack.c.b16 %v156, %v153
    %v187 = vpack.c.b16 %v160, %v157
    %v188 = vpack.c.b16 %v161, %v158
    %v189 = vpack.c.b16 %v162, %v159
    %v190 = vpack.c.b16 %v166, %v163
    %v191 = vpack.c.b16 %v167, %v164
    %v192 = vpack.c.b16 %v168, %v165
    %217 = vmatpush.bf16.msra.mxu0 %v190
    %218 = vmatpush.bf16.msra.mxu0 %v187
    %219 = vmatpush.bf16.msra.mxu0 %v184
    %220 = vmatpush.bf16.msra.mxu0 %v181
    %221 = vmatpush.bf16.msra.mxu0 %v178
    %222 = vmatpush.bf16.msra.mxu0 %v175
    %223 = vmatpush.bf16.msra.mxu0 %v172
    %224 = vmatpush.bf16.msra.mxu0 %v169
    %225 = vmatmul.bf16.gmra.mxu0 %v56
    %v226 = vpop.f32.mrf.mxu0
    %v227 = vadd.f32 0.0, %v226
    %v228 = vpop.f32.mrf.mxu0
    %229 = vdwg.mxu0
    %230 = vmatpush.bf16.msra.mxu0 %v191
    %231 = vmatpush.bf16.msra.mxu0 %v188
    %232 = vmatpush.bf16.msra.mxu0 %v185
    %233 = vmatpush.bf16.msra.mxu0 %v182
    %234 = vmatpush.bf16.msra.mxu0 %v179
    %235 = vmatpush.bf16.msra.mxu0 %v176
    %236 = vmatpush.bf16.msra.mxu0 %v173
    %237 = vmatpush.bf16.msra.mxu0 %v170
    %238 = vmatmul.bf16.gmra.mxu0 %v56
    %v239 = vpop.f32.mrf.mxu0
    %v240 = vadd.f32 0.0, %v239
    %v241 = vpop.f32.mrf.mxu0
    %242 = vdwg.mxu0
    %243 = vmatpush.bf16.msra.mxu0 %v192
    %244 = vmatpush.bf16.msra.mxu0 %v189
    %245 = vmatpush.bf16.msra.mxu0 %v186
    %246 = vmatpush.bf16.msra.mxu0 %v183
    %247 = vmatpush.bf16.msra.mxu0 %v180
    %248 = vmatpush.bf16.msra.mxu0 %v177
    %249 = vmatpush.bf16.msra.mxu0 %v174
    %250 = vmatpush.bf16.msra.mxu0 %v171
    %251 = vmatmul.bf16.gmra.mxu0 %v56
    %v252 = vpop.f32.mrf.mxu0
    %v253 = vadd.f32 0.0, %v252
    %v254 = vpop.f32.mrf.mxu0
    %255 = vdwg.mxu0
    %v256 = vld [vmem:[%s4] sm:$0x1]
    %258 = vset.pattern.permute.xlu0 0
    %259 = vperm.xlu0 %258, %v53
    %v260 = vpop.permute.xlu0 %259
    %v262 = vperm.slane %v256, 0
    %v263 = vmul.f32 %v260, %v262
    %v264 = vadd.f32 %v263, %v227
    %v265 = vld [vmem:[%s4 + $0x3] sm:$0x1]
    %v266 = vperm.slane %v265, 0
    %v267 = vadd.f32 %v264, %v266
    %v268 = vxor.u32 %v267, 2147483648
    %v269 = vmul.f32 %v268, 1.442695
    %v270 = vpow.pop %v269
    %v271 = vadd.f32 %v270, 1.0
    %v272 = vrcp.pop %v271
    %v273 = vmul.f32 %v271, %v272
    %v274 = vsub.f32 1.0, %v273
    %v275 = vmul.f32 %v272, %v274
    %v276 = vadd.f32 %v272, %v275
    %vm277 = vweird.f32 %v271
    %vm278 = vweird.f32 %v272
    %vm279 = vmor %vm277, %vm278
    %v280 = vsel %vm279, %v272, %v276
    %v281 = vand.u32 2147483647, %v271
    %vm282 = vcmp.eq.f32.partialorder %v281, 8.507059e+37
    %v283 = vand.u32 %v271, 2147483648
    %v284 = vor.u32 1.1754944e-38, %v283
    %v285 = vsel %vm282, %v284, %v280
    %v286 = vmul.f32 1.0, %v285
    %v287 = vld [vmem:[%s4 + $0x1] sm:$0x1]
    %v288 = vperm.slane %v287, 0
    %v289 = vmul.f32 %v260, %v288
    %v290 = vadd.f32 %v289, %v240
    %v291 = vld [vmem:[%s4 + $0x4] sm:$0x1]
    %v292 = vperm.slane %v291, 0
    %v293 = vadd.f32 %v290, %v292
    %v294 = vxor.u32 %v293, 2147483648
    %v295 = vmul.f32 %v294, 1.442695
    %v296 = vpow.pop %v295
    %v297 = vadd.f32 %v296, 1.0
    %v298 = vrcp.pop %v297
    %v299 = vmul.f32 %v297, %v298
    %v300 = vsub.f32 1.0, %v299
    %v301 = vmul.f32 %v298, %v300
    %v302 = vadd.f32 %v298, %v301
    %vm303 = vweird.f32 %v297
    %vm304 = vweird.f32 %v298
    %vm305 = vmor %vm303, %vm304
    %v306 = vsel %vm305, %v298, %v302
    %v307 = vand.u32 2147483647, %v297
    %vm308 = vcmp.eq.f32.partialorder %v307, 8.507059e+37
    %v309 = vand.u32 %v297, 2147483648
    %v310 = vor.u32 1.1754944e-38, %v309
    %v311 = vsel %vm308, %v310, %v306
    %v312 = vmul.f32 1.0, %v311
    %v313 = vld [vmem:[%s4 + $0x2] sm:$0x1]
    %v314 = vperm.slane %v313, 0
    %v315 = vmul.f32 %v260, %v314
    %v316 = vld [vmem:[%s4 + $0x5] sm:$0x1]
    %v317 = vperm.slane %v316, 0
    %v318 = vadd.f32 %v315, %v317
    %v319 = vld [vmem:[%s4 + $0x6] sm:$0x1]
    %v320 = vperm.slane %v319, 0
    %v321 = vadd.f32 %v253, %v320
    %v322 = vmul.f32 %v286, %v321
    %v323 = vadd.f32 %v318, %v322
    %v324 = vtanh.pop %v323
    %v325 = vsub.f32 1.0, %v312
    %v326 = vmul.f32 %v325, %v324
    %v327 = vmul.f32 %v312, %v54
    %v328 = vadd.f32 %v326, %v327
    %v329 = vlaneseq
    %v330 = vand.u32 %v329, 127
    %331 = vset.pattern.permute.xlu0 0
    %332 = vperm.xlu0 %331, %v55
    %v333 = vpop.permute.xlu0 %332
    %vm334 = vcmp.eq.s32.totalorder %v330, %v333
    %v335 = vsel %vm334, 1, 0
    %v336 = vcvt.s32.f32 %v335
    %v337 = vadd.s32 %v330, 128
    %vm338 = vcmp.eq.s32.totalorder %v337, %v333
    %v339 = vsel %vm338, 1, 0
    %v340 = vcvt.s32.f32 %v339
    %v341 = vld [vmem:[%s4 + $0x8] sm:$0x1]
    %v342 = vperm.slane %v341, 0
    %v343 = vmul.f32 %v336, %v342
    %344 = vadd.xlane.f32.xlu0 %v343
    %v345 = vpop.xlane.xlu0 %344
    %v346 = vld [vmem:[%s4 + $0x9] sm:$0x1]
    %v347 = vperm.slane %v346, 0
    %v348 = vmul.f32 %v340, %v347
    %349 = vadd.xlane.f32.xlu0 %v348
    %v350 = vpop.xlane.xlu0 %349
    %v351 = vadd.f32 %v345, %v350
    %v352 = vld [vmem:[%s4 + $0x7] sm:$0x1]
    %v353 = vperm.slane %v352, 0
    %v354 = vmul.f32 %v328, %v353
    %355 = vadd.xlane.f32.xlu0 %v354
    %v356 = vpop.xlane.xlu0 %355
    %v357 = vadd.f32 %v351, %v356
    %v358 = vxor.u32 %v357, 2147483648
    %v359 = vmul.f32 %v358, 1.442695
    %v360 = vpow.pop %v359
    %v361 = vadd.f32 %v360, 1.0
    %v362 = vrcp.pop %v361
    %v363 = vmul.f32 %v361, %v362
    %v364 = vsub.f32 1.0, %v363
    %v365 = vmul.f32 %v362, %v364
    %v366 = vadd.f32 %v362, %v365
    %vm367 = vweird.f32 %v361
    %vm368 = vweird.f32 %v362
    %vm369 = vmor %vm367, %vm368
    %v370 = vsel %vm369, %v362, %v366
    %v371 = vand.u32 2147483647, %v361
    %vm372 = vcmp.eq.f32.partialorder %v371, 8.507059e+37
    %v373 = vand.u32 %v361, 2147483648
    %v374 = vor.u32 1.1754944e-38, %v373
    %v375 = vsel %vm372, %v374, %v370
    %v376 = vmul.f32 1.0, %v375
    %377 = vst [vmem:[#allocation7] sm:$0xff] %v328
    %378 = vst [vmem:[%s5] sm:$0xff] %v376
    // Predicated region
    $region30: #{gru_directly_forward.1} parent=1 // pred_check
      _
    $region31: #{gru_directly_forward.1} parent=1 // pred_check_branch
      %380 = sbr.rel (0) target = $region33
    $region32: #{gru_directly_forward.1} parent=1 // pred_region
      _
    $region33: #{gru_directly_forward.1} parent=1 // pred_fallthru
      _
    // Predicated region
    $region34: #{gru_directly_forward.1} parent=1 // pred_check
      _
    $region35: #{gru_directly_forward.1} parent=1 // pred_check_branch
      %382 = sbr.rel (0) target = $region37
    $region36: #{gru_directly_forward.1} parent=1 // pred_region
      %384 = vsyncadd [#allocation4], 0
      %s386 = sshll.u32 [#allocation7], 4
      %s387 = int_to_ptr.vmem [resolvable:$true] %s386
      %s388 = sshll.u32 %s6, 4
      %s389 = int_to_ptr.hbm [resolvable:$true] %s388
      %391 = dma.vmem_to_hbm [thread:$0]  %s387, 128, %s389, [#allocation4]
    $region37: #{gru_directly_forward.1} parent=1 // pred_fallthru
      _
    // Predicated region
    $region38: #{gru_directly_forward.1} parent=1 // pred_check
      _
    $region39: #{gru_directly_forward.1} parent=1 // pred_check_branch
      %393 = sbr.rel (0) target = $region41
    $region40: #{gru_directly_forward.1} parent=1 // pred_region
      _
    $region41: #{gru_directly_forward.1} parent=1 // pred_fallthru
      _
    // Predicated region
    $region42: #{gru_directly_forward.1} parent=1 // pred_check
      _
    $region43: #{gru_directly_forward.1} parent=1 // pred_check_branch
      %395 = sbr.rel (0) target = $region45
    $region44: #{gru_directly_forward.1} parent=1 // pred_region
      %397 = dma.done [#allocation4], 128
    $region45: #{gru_directly_forward.1} parent=1 // pred_fallthru
      _
    %398 = vsyncpa [#allocation3], 1
    %399 = vsyncpa [#allocation6], 1
    %400 = vsyncpa [#allocation4], 1

</llo_original>
